<compile_context>
chip_gen: v5e
topology: v5e:2x2
jax: 0.10.0
libtpu: 0.0.40
codegen_flags: <defaults>
</compile_context>

<pallas_src>
import jax
import jax.numpy as jnp
from jax import lax
from jax.experimental import pallas as pl
from jax.experimental.pallas import tpu as pltpu


def _round_up(x, m):
    return ((x + m - 1) // m) * m


def _make_stats_kernel(ks, dilation, TT, new_T):
    """Pass 1: conv + bias + LeakyReLU, accumulate per-channel sum / sumsq over all rows."""

    def stats_kernel(x_ref, w_ref, bias_ref, sum_ref, sumsq_ref):
        b = pl.program_id(0)
        t = pl.program_id(1)

        @pl.when(jnp.logical_and(b == 0, t == 0))
        def _():
            sum_ref[...] = jnp.zeros_like(sum_ref)
            sumsq_ref[...] = jnp.zeros_like(sumsq_ref)

        base = pl.multiple_of(t * TT, 8)
        Fp = w_ref.shape[-1]
        acc = jnp.zeros((TT, Fp), jnp.float32)
        for tap in range(ks):  # small static unroll (context taps)
            xs = x_ref[0, pl.ds(base + tap * dilation, TT), :]      # (TT, D)
            acc += jnp.dot(xs, w_ref[tap], preferred_element_type=jnp.float32)
        y = acc + bias_ref[...]
        y = jnp.where(y >= 0.0, y, 0.01 * y)                        # LeakyReLU (slope 0.01)
        # Dropout with p=0.0 is the identity.

        # Mask timesteps belonging to tile padding so BN stats match the global batch stats.
        row = base + lax.broadcasted_iota(jnp.int32, (TT, 1), 0)
        valid = row < new_T
        ym = jnp.where(valid, y, 0.0)
        sum_ref[...] += jnp.sum(ym, axis=0, keepdims=True)
        sumsq_ref[...] += jnp.sum(ym * ym, axis=0, keepdims=True)

    return stats_kernel


def _make_norm_kernel(ks, dilation, TT):
    """Pass 2: recompute conv + LeakyReLU (cheap) and apply fused BN affine (one FMA)."""

    def norm_kernel(x_ref, w_ref, bias_ref, scale_ref, shift_ref, o_ref):
        t = pl.program_id(1)
        base = pl.multiple_of(t * TT, 8)
        Fp = w_ref.shape[-1]
        acc = jnp.zeros((TT, Fp), jnp.float32)
        for tap in range(ks):
            xs = x_ref[0, pl.ds(base + tap * dilation, TT), :]      # (TT, D)
            acc += jnp.dot(xs, w_ref[tap], preferred_element_type=jnp.float32)
        y = acc + bias_ref[...]
        y = jnp.where(y >= 0.0, y, 0.01 * y)
        o_ref[0] = y * scale_ref[...] + shift_ref[...]

    return norm_kernel


def tdnn_forward(x, weight, bias, gamma, beta, *, context_size, stride=1,
                 dilation=1, padding=0, row_tile=256, eps=1e-5):
    """x: (B, T, D) f32 -> (B, new_T, F) f32.  Training-mode BatchNorm (batch statistics)."""
    assert stride == 1, "fused kernel supports stride=1 (FTDNN uses stride=1 everywhere)"
    # TODO(synk): stride>1 would need strided row loads (pl.ds(start, TT, stride=stride)).
    B, T, D = x.shape
    F = weight.shape[0]
    ks = context_size

    # Conv "same-style" zero padding on the time axis.
    xp = jnp.pad(x, ((0, 0), (padding, padding), (0, 0))) if padding else x
    Tp = xp.shape[1]
    new_T = (Tp - dilation * (ks - 1) - 1) // stride + 1
    assert new_T > 0

    # Row (output-time) tile: multiple of 8 sublanes.
    TT = min(_round_up(row_tile, 8), _round_up(new_T, 8))
    n_t = (new_T + TT - 1) // TT
    T_out_pad = n_t * TT
    T_need = T_out_pad + dilation * (ks - 1)
    if Tp < T_need:  # zero-pad time so every tap slice of the last tile is in-bounds
        xp = jnp.pad(xp, ((0, 0), (0, T_need - Tp), (0, 0)))
    Tpad = xp.shape[1]

    # Lane-dense feature axis: pad F up to a multiple of 128 (padded lanes stay exactly zero).
    Fp = _round_up(F, 128)
    w_k = jnp.transpose(weight, (2, 1, 0))                   # (ks, D, F): w_k[tap, d, f]
    if Fp != F:
        w_k = jnp.pad(w_k, ((0, 0), (0, 0), (0, Fp - F)))
        bias_p = jnp.pad(bias, (0, Fp - F))
        gamma_p = jnp.pad(gamma, (0, Fp - F))
        beta_p = jnp.pad(beta, (0, Fp - F))
    else:
        bias_p, gamma_p, beta_p = bias, gamma, beta
    bias_row = bias_p.reshape(1, Fp)

    grid = (B, n_t)
    # x[b] stays VMEM-resident across the inner time-tile axis (index_map constant in t).
    x_spec = pl.BlockSpec((1, Tpad, D), lambda b, t: (b, 0, 0))
    w_spec = pl.BlockSpec((ks, D, Fp), lambda b, t: (0, 0, 0))
    row_spec = pl.BlockSpec((1, Fp), lambda b, t: (0, 0))

    flops = 2 * B * n_t * TT * ks * D * Fp
    x_bytes = xp.size * 4
    w_bytes = w_k.size * 4

    # -------- pass 1: per-channel sum / sum-of-squares of LeakyReLU(conv(x) + bias) --------
    sum_c, sumsq_c = pl.pallas_call(
        _make_stats_kernel(ks, dilation, TT, new_T),
        out_shape=(jax.ShapeDtypeStruct((1, Fp), jnp.float32),
                   jax.ShapeDtypeStruct((1, Fp), jnp.float32)),
        grid=grid,
        in_specs=[x_spec, w_spec, row_spec],
        out_specs=(row_spec, row_spec),
        compiler_params=pltpu.CompilerParams(
            dimension_semantics=("arbitrary", "arbitrary")),
        cost_estimate=pl.CostEstimate(
            flops=flops, transcendentals=0,
            bytes_accessed=x_bytes + w_bytes + 2 * Fp * 4),
    )(xp, w_k, bias_row)

    # -------- tiny finalize in plain JAX: biased variance, fold BN into one scale/shift --------
    count = jnp.float32(B * new_T)
    mean = sum_c / count
    var = jnp.maximum(sumsq_c / count - mean * mean, 0.0)
    scale = gamma_p.reshape(1, Fp) * lax.rsqrt(var + eps)
    shift = beta_p.reshape(1, Fp) - mean * scale
    # TODO(synk): BN running-stats (momentum) update is a training side effect, not part of the
    # numerical forward output, so it is not materialized here.

    # -------- pass 2: recompute conv + LeakyReLU and apply fused affine, tiled & parallel --------
    out_pad = pl.pallas_call(
        _make_norm_kernel(ks, dilation, TT),
        out_shape=jax.ShapeDtypeStruct((B, T_out_pad, Fp), jnp.float32),
        grid=grid,
        in_specs=[x_spec, w_spec, row_spec, row_spec, row_spec],
        out_specs=pl.BlockSpec((1, TT, Fp), lambda b, t: (b, t, 0)),
        compiler_params=pltpu.CompilerParams(
            dimension_semantics=("parallel", "parallel")),
        cost_estimate=pl.CostEstimate(
            flops=flops, transcendentals=0,
            bytes_accessed=x_bytes + w_bytes + B * T_out_pad * Fp * 4),
    )(xp, w_k, bias_row, scale, shift)

    return out_pad[:, :new_T, :F]


def reference_forward(x, weight, bias, gamma, beta, *, context_size, stride, dilation, padding):
    """Pure-JAX reference mirroring the PyTorch TDNN block (training-mode BN)."""
    xt = jnp.transpose(x, (0, 2, 1))                                # (B, D, T) == NCW
    y = lax.conv_general_dilated(
        xt, weight,
        window_strides=(stride,),
        padding=[(padding, padding)],
        rhs_dilation=(dilation,),
        dimension_numbers=("NCW", "OIW", "NCW"),
    ) + bias[None, :, None]
    y = jnp.where(y >= 0.0, y, 0.01 * y)                            # LeakyReLU
    mean = jnp.mean(y, axis=(0, 2), keepdims=True)                  # BatchNorm1d batch stats
    var = jnp.mean((y - mean) ** 2, axis=(0, 2), keepdims=True)
    y = (y - mean) * lax.rsqrt(var + 1e-5)
    y = y * gamma[None, :, None] + beta[None, :, None]
    return jnp.transpose(y, (0, 2, 1))                              # (B, new_T, F)


def _run_case(name, key, *, B, T, D, F, ks, stride, dilation, padding, row_tile):
    kx, kw, kb, kg, kbt = jax.random.split(key, 5)
    x = jax.random.normal(kx, (B, T, D), dtype=jnp.float32)
    fan_in = D * ks
    bound = 1.0 / (fan_in ** 0.5)
    weight = jax.random.uniform(kw, (F, D, ks), minval=-bound, maxval=bound, dtype=jnp.float32)
    bias = jax.random.uniform(kb, (F,), minval=-bound, maxval=bound, dtype=jnp.float32)
    gamma = 1.0 + 0.1 * jax.random.normal(kg, (F,), dtype=jnp.float32)
    beta = 0.1 * jax.random.normal(kbt, (F,), dtype=jnp.float32)

    out = tdnn_forward(x, weight, bias, gamma, beta,
                       context_size=ks, stride=stride, dilation=dilation,
                       padding=padding, row_tile=row_tile)
    out = jax.block_until_ready(out)

    ref = reference_forward(x, weight, bias, gamma, beta,
                            context_size=ks, stride=stride, dilation=dilation, padding=padding)
    ref = jax.block_until_ready(ref)

    new_T = (T + 2 * padding - dilation * (ks - 1) - 1) // stride + 1
    assert out.shape == (B, new_T, F), f"{name}: bad shape {out.shape}"
    assert jnp.allclose(out, ref, rtol=1e-4, atol=1e-4), f"{name}: mismatch vs reference"


if __name__ == "__main__":
    key = jax.random.PRNGKey(0)
    k1, k2, k3 = jax.random.split(key, 3)

    # Case 1: TDNN defaults-ish (input_dim=23), F padded 64 -> 128 lanes, single time tile.
    _run_case("small", k1, B=2, T=16, D=23, F=64, ks=5,
              stride=1, dilation=1, padding=0, row_tile=256)

    # Case 2: FTDNN.layer01-like (in=30, out=512, ks=5, padding=2), multiple time tiles.
    _run_case("layer01_like", k2, B=2, T=40, D=30, F=512, ks=5,
              stride=1, dilation=1, padding=2, row_tile=16)

    # Case 3: dilation > 1 + padding, exercises tap offsets and tile-tail masking.
    _run_case("dilated", k3, B=1, T=24, D=16, F=64, ks=3,
              stride=1, dilation=2, padding=1, row_tile=8)

    print("KERNEL_OK")
</pallas_src>

<mosaic_0001>
module attributes {stable_mosaic.version = 11 : i64} {
  func.func @stats_kernel(%arg0: i32, %arg1: i32, %arg2: memref<1x20x23xf32, #tpu.memory_space<vmem>>, %arg3: memref<5x23x128xf32, #tpu.memory_space<vmem>>, %arg4: memref<1x128xf32, #tpu.memory_space<vmem>>, %arg5: memref<1x128xf32, #tpu.memory_space<vmem>>, %arg6: memref<1x128xf32, #tpu.memory_space<vmem>>) attributes {dimension_semantics = [#tpu.dimension_semantics<arbitrary>, #tpu.dimension_semantics<arbitrary>], iteration_bounds = array<i64: 2, 1>, scalar_prefetch = 0 : i64, scratch_operands = 0 : i64, tpu.core_type = #tpu.core_type<tc>, window_params = [{transform_indices = @transform_0, window_bounds = array<i64: 1, 20, 23>}, {pipeline_mode = #tpu.pipeline_mode<synchronous>, transform_indices = @transform_1, window_bounds = array<i64: 5, 23, 128>}, {pipeline_mode = #tpu.pipeline_mode<synchronous>, transform_indices = @transform_2, window_bounds = array<i64: 1, 128>}, {pipeline_mode = #tpu.pipeline_mode<synchronous>, transform_indices = @transform_3, window_bounds = array<i64: 1, 128>}, {pipeline_mode = #tpu.pipeline_mode<synchronous>, transform_indices = @transform_4, window_bounds = array<i64: 1, 128>}]} {
    %c0_i32 = arith.constant 0 : i32
    %0 = arith.cmpi eq, %arg0, %c0_i32 : i32
    %c0_i32_0 = arith.constant 0 : i32
    %1 = arith.cmpi eq, %arg1, %c0_i32_0 : i32
    %2 = arith.andi %0, %1 : i1
    %3 = arith.extui %2 : i1 to i32
    %c0_i32_1 = arith.constant 0 : i32
    %4 = arith.cmpi ne, %3, %c0_i32_1 : i32
    scf.if %4 {
      %cst_43 = arith.constant 0.000000e+00 : f32
      %76 = vector.broadcast %cst_43 : f32 to vector<1x128xf32>
      %c0_44 = arith.constant 0 : index
      %c0_45 = arith.constant 0 : index
      %77 = vector.load %arg5[%c0_44, %c0_45] : memref<1x128xf32, #tpu.memory_space<vmem>>, vector<1x128xf32>
      tpu.vector_store %arg5[%c0_44, %c0_45], %76 {strides = array<i32>} : memref<1x128xf32, #tpu.memory_space<vmem>>, vector<1x128xf32>,
      %cst_46 = arith.constant 0.000000e+00 : f32
      %78 = vector.broadcast %cst_46 : f32 to vector<1x128xf32>
      %c0_47 = arith.constant 0 : index
      %c0_48 = arith.constant 0 : index
      %79 = vector.load %arg6[%c0_47, %c0_48] : memref<1x128xf32, #tpu.memory_space<vmem>>, vector<1x128xf32>
      tpu.vector_store %arg6[%c0_47, %c0_48], %78 {strides = array<i32>} : memref<1x128xf32, #tpu.memory_space<vmem>>, vector<1x128xf32>,
    } else {
    }
    %c16_i32 = arith.constant 16 : i32
    %5 = arith.muli %arg1, %c16_i32 : i32
    %6 = tpu.assume_multiple %5, 8 : i32
    %cst = arith.constant 0.000000e+00 : f32
    %7 = vector.broadcast %cst : f32 to vector<16x128xf32>
    %c0_i32_2 = arith.constant 0 : i32
    %8 = arith.addi %6, %c0_i32_2 : i32
    %c0 = arith.constant 0 : index
    %9 = arith.index_cast %8 : i32 to index
    %c0_3 = arith.constant 0 : index
    %10 = vector.load %arg2[%c0, %9, %c0_3] : memref<1x20x23xf32, #tpu.memory_space<vmem>>, vector<1x16x23xf32>
    %11 = vector.shape_cast %10 : vector<1x16x23xf32> to vector<16x23xf32>
    %c0_4 = arith.constant 0 : index
    %c0_5 = arith.constant 0 : index
    %c0_6 = arith.constant 0 : index
    %12 = vector.load %arg3[%c0_4, %c0_5, %c0_6] : memref<5x23x128xf32, #tpu.memory_space<vmem>>, vector<1x23x128xf32>
    %13 = vector.shape_cast %12 : vector<1x23x128xf32> to vector<23x128xf32>
    %cst_7 = arith.constant dense<0.000000e+00> : vector<16x128xf32>
    %14 = tpu.matmul %11, %13, %cst_7 {dimension_numbers = #tpu.dot_dimension_numbers<[1], [0], [0], [1], [0, 0, 1, 1], [], []>} : vector<16x23xf32>, vector<23x128xf32>, vector<16x128xf32> -> vector<16x128xf32>
    %15 = arith.addf %7, %14 : vector<16x128xf32>
    %c1_i32 = arith.constant 1 : i32
    %16 = arith.addi %6, %c1_i32 : i32
    %c0_8 = arith.constant 0 : index
    %17 = arith.index_cast %16 : i32 to index
    %c0_9 = arith.constant 0 : index
    %18 = vector.load %arg2[%c0_8, %17, %c0_9] : memref<1x20x23xf32, #tpu.memory_space<vmem>>, vector<1x16x23xf32>
    %19 = vector.shape_cast %18 : vector<1x16x23xf32> to vector<16x23xf32>
    %c1 = arith.constant 1 : index
    %c0_10 = arith.constant 0 : index
    %c0_11 = arith.constant 0 : index
    %20 = vector.load %arg3[%c1, %c0_10, %c0_11] : memref<5x23x128xf32, #tpu.memory_space<vmem>>, vector<1x23x128xf32>
    %21 = vector.shape_cast %20 : vector<1x23x128xf32> to vector<23x128xf32>
    %cst_12 = arith.constant dense<0.000000e+00> : vector<16x128xf32>
    %22 = tpu.matmul %19, %21, %cst_12 {dimension_numbers = #tpu.dot_dimension_numbers<[1], [0], [0], [1], [0, 0, 1, 1], [], []>} : vector<16x23xf32>, vector<23x128xf32>, vector<16x128xf32> -> vector<16x128xf32>
    %23 = arith.addf %15, %22 : vector<16x128xf32>
    %c2_i32 = arith.constant 2 : i32
    %24 = arith.addi %6, %c2_i32 : i32
    %c0_13 = arith.constant 0 : index
    %25 = arith.index_cast %24 : i32 to index
    %c0_14 = arith.constant 0 : index
    %26 = vector.load %arg2[%c0_13, %25, %c0_14] : memref<1x20x23xf32, #tpu.memory_space<vmem>>, vector<1x16x23xf32>
    %27 = vector.shape_cast %26 : vector<1x16x23xf32> to vector<16x23xf32>
    %c2 = arith.constant 2 : index
    %c0_15 = arith.constant 0 : index
    %c0_16 = arith.constant 0 : index
    %28 = vector.load %arg3[%c2, %c0_15, %c0_16] : memref<5x23x128xf32, #tpu.memory_space<vmem>>, vector<1x23x128xf32>
    %29 = vector.shape_cast %28 : vector<1x23x128xf32> to vector<23x128xf32>
    %cst_17 = arith.constant dense<0.000000e+00> : vector<16x128xf32>
    %30 = tpu.matmul %27, %29, %cst_17 {dimension_numbers = #tpu.dot_dimension_numbers<[1], [0], [0], [1], [0, 0, 1, 1], [], []>} : vector<16x23xf32>, vector<23x128xf32>, vector<16x128xf32> -> vector<16x128xf32>
    %31 = arith.addf %23, %30 : vector<16x128xf32>
    %c3_i32 = arith.constant 3 : i32
    %32 = arith.addi %6, %c3_i32 : i32
    %c0_18 = arith.constant 0 : index
    %33 = arith.index_cast %32 : i32 to index
    %c0_19 = arith.constant 0 : index
    %34 = vector.load %arg2[%c0_18, %33, %c0_19] : memref<1x20x23xf32, #tpu.memory_space<vmem>>, vector<1x16x23xf32>
    %35 = vector.shape_cast %34 : vector<1x16x23xf32> to vector<16x23xf32>
    %c3 = arith.constant 3 : index
    %c0_20 = arith.constant 0 : index
    %c0_21 = arith.constant 0 : index
    %36 = vector.load %arg3[%c3, %c0_20, %c0_21] : memref<5x23x128xf32, #tpu.memory_space<vmem>>, vector<1x23x128xf32>
    %37 = vector.shape_cast %36 : vector<1x23x128xf32> to vector<23x128xf32>
    %cst_22 = arith.constant dense<0.000000e+00> : vector<16x128xf32>
    %38 = tpu.matmul %35, %37, %cst_22 {dimension_numbers = #tpu.dot_dimension_numbers<[1], [0], [0], [1], [0, 0, 1, 1], [], []>} : vector<16x23xf32>, vector<23x128xf32>, vector<16x128xf32> -> vector<16x128xf32>
    %39 = arith.addf %31, %38 : vector<16x128xf32>
    %c4_i32 = arith.constant 4 : i32
    %40 = arith.addi %6, %c4_i32 : i32
    %c0_23 = arith.constant 0 : index
    %41 = arith.index_cast %40 : i32 to index
    %c0_24 = arith.constant 0 : index
    %42 = vector.load %arg2[%c0_23, %41, %c0_24] : memref<1x20x23xf32, #tpu.memory_space<vmem>>, vector<1x16x23xf32>
    %43 = vector.shape_cast %42 : vector<1x16x23xf32> to vector<16x23xf32>
    %c4 = arith.constant 4 : index
    %c0_25 = arith.constant 0 : index
    %c0_26 = arith.constant 0 : index
    %44 = vector.load %arg3[%c4, %c0_25, %c0_26] : memref<5x23x128xf32, #tpu.memory_space<vmem>>, vector<1x23x128xf32>
    %45 = vector.shape_cast %44 : vector<1x23x128xf32> to vector<23x128xf32>
    %cst_27 = arith.constant dense<0.000000e+00> : vector<16x128xf32>
    %46 = tpu.matmul %43, %45, %cst_27 {dimension_numbers = #tpu.dot_dimension_numbers<[1], [0], [0], [1], [0, 0, 1, 1], [], []>} : vector<16x23xf32>, vector<23x128xf32>, vector<16x128xf32> -> vector<16x128xf32>
    %47 = arith.addf %39, %46 : vector<16x128xf32>
    %c0_28 = arith.constant 0 : index
    %c0_29 = arith.constant 0 : index
    %48 = vector.load %arg4[%c0_28, %c0_29] : memref<1x128xf32, #tpu.memory_space<vmem>>, vector<1x128xf32>
    %49 = vector.broadcast %48 : vector<1x128xf32> to vector<16x128xf32>
    %50 = arith.addf %47, %49 : vector<16x128xf32>
    %cst_30 = arith.constant 0.000000e+00 : f32
    %51 = vector.broadcast %cst_30 : f32 to vector<16x128xf32>
    %52 = arith.cmpf oge, %50, %51 : vector<16x128xf32>
    %cst_31 = arith.constant 0.00999999977 : f32
    %53 = vector.broadcast %cst_31 : f32 to vector<16x128xf32>
    %54 = arith.mulf %53, %50 : vector<16x128xf32>
    %55 = arith.select %52, %50, %54 : vector<16x128xi1>, vector<16x128xf32>
    %56 = tpu.iota {dimensions = array<i32: 0>} : vector<16x1xi32>
    %57 = vector.broadcast %6 : i32 to vector<16x1xi32>
    %58 = arith.addi %57, %56 : vector<16x1xi32>
    %c12_i32 = arith.constant 12 : i32
    %59 = vector.broadcast %c12_i32 : i32 to vector<16x1xi32>
    %60 = arith.cmpi slt, %58, %59 : vector<16x1xi32>
    %cst_32 = arith.constant 0.000000e+00 : f32
    %61 = vector.shape_cast %60 : vector<16x1xi1> to vector<16x1xi1>
    %62 = vector.broadcast %61 : vector<16x1xi1> to vector<16x128xi1>
    %63 = vector.broadcast %cst_32 : f32 to vector<16x128xf32>
    %64 = arith.select %62, %55, %63 : vector<16x128xi1>, vector<16x128xf32>
    %c0_33 = arith.constant 0 : index
    %c0_34 = arith.constant 0 : index
    %65 = vector.load %arg5[%c0_33, %c0_34] : memref<1x128xf32, #tpu.memory_space<vmem>>, vector<1x128xf32>
    %cst_35 = arith.constant dense<0.000000e+00> : vector<128xf32>
    %66 = vector.multi_reduction <add>, %64, %cst_35 [0] : vector<16x128xf32> to vector<128xf32>
    %67 = vector.shape_cast %66 : vector<128xf32> to vector<1x128xf32>
    %68 = arith.addf %65, %67 : vector<1x128xf32>
    %c0_36 = arith.constant 0 : index
    %c0_37 = arith.constant 0 : index
    %69 = vector.load %arg5[%c0_36, %c0_37] : memref<1x128xf32, #tpu.memory_space<vmem>>, vector<1x128xf32>
    tpu.vector_store %arg5[%c0_36, %c0_37], %68 {strides = array<i32>} : memref<1x128xf32, #tpu.memory_space<vmem>>, vector<1x128xf32>,
    %c0_38 = arith.constant 0 : index
    %c0_39 = arith.constant 0 : index
    %70 = vector.load %arg6[%c0_38, %c0_39] : memref<1x128xf32, #tpu.memory_space<vmem>>, vector<1x128xf32>
    %71 = arith.mulf %64, %64 : vector<16x128xf32>
    %cst_40 = arith.constant dense<0.000000e+00> : vector<128xf32>
    %72 = vector.multi_reduction <add>, %71, %cst_40 [0] : vector<16x128xf32> to vector<128xf32>
    %73 = vector.shape_cast %72 : vector<128xf32> to vector<1x128xf32>
    %74 = arith.addf %70, %73 : vector<1x128xf32>
    %c0_41 = arith.constant 0 : index
    %c0_42 = arith.constant 0 : index
    %75 = vector.load %arg6[%c0_41, %c0_42] : memref<1x128xf32, #tpu.memory_space<vmem>>, vector<1x128xf32>
    tpu.vector_store %arg6[%c0_41, %c0_42], %74 {strides = array<i32>} : memref<1x128xf32, #tpu.memory_space<vmem>>, vector<1x128xf32>,
    return
  }
  func.func @transform_0(%arg0: i32, %arg1: i32) -> (i32, i32, i32) {
    %c0_i32 = arith.constant 0 : i32
    %c0_i32_0 = arith.constant 0 : i32
    %c0_i32_1 = arith.constant 0 : i32
    return %arg0, %c0_i32, %c0_i32_0 : i32, i32, i32
  }
  func.func @transform_1(%arg0: i32, %arg1: i32) -> (i32, i32, i32) {
    %c0_i32 = arith.constant 0 : i32
    %c0_i32_0 = arith.constant 0 : i32
    %c0_i32_1 = arith.constant 0 : i32
    %c0_i32_2 = arith.constant 0 : i32
    return %c0_i32, %c0_i32_0, %c0_i32_1 : i32, i32, i32
  }
  func.func @transform_2(%arg0: i32, %arg1: i32) -> (i32, i32) {
    %c0_i32 = arith.constant 0 : i32
    %c0_i32_0 = arith.constant 0 : i32
    %c0_i32_1 = arith.constant 0 : i32
    return %c0_i32, %c0_i32_0 : i32, i32
  }
  func.func @transform_3(%arg0: i32, %arg1: i32) -> (i32, i32) {
    %c0_i32 = arith.constant 0 : i32
    %c0_i32_0 = arith.constant 0 : i32
    %c0_i32_1 = arith.constant 0 : i32
    return %c0_i32, %c0_i32_0 : i32, i32
  }
  func.func @transform_4(%arg0: i32, %arg1: i32) -> (i32, i32) {
    %c0_i32 = arith.constant 0 : i32
    %c0_i32_0 = arith.constant 0 : i32
    %c0_i32_1 = arith.constant 0 : i32
    return %c0_i32, %c0_i32_0 : i32, i32
  }
}

</mosaic_0001>

<llo_original>
// kernel: tpu_custom_call.1
$region0: #{tpu_custom_call.1}
  #allocation0 [shape = 'u32[]', space=smem, size = 0x4, offset = 0x4, fixed_abs, tag = 'smem constant byte address 0x4 - core index']
  #allocation1 [shape = 'u32[72,128]{1,0:T(1,128)}', space=vmem, size = 0x9000, scoped, tag = 'internal scratch']
  %s0 = inlined_call_operand.vmem [shape: f32[2,20,23], index: 0, kind: input, shape index: {}]
  %s1 = inlined_call_operand.hbm [shape: f32[5,23,128], index: 1, kind: input, shape index: {}]
  %s2 = inlined_call_operand.vmem [shape: f32[1,128], index: 2, kind: input, shape index: {}]
  %s3 = inlined_call_operand.hbm [shape: f32[1,128], index: 3, kind: output, shape index: {0}]
  %s4 = inlined_call_operand.hbm [shape: f32[1,128], index: 4, kind: output, shape index: {1}]
  %5 = xla_tuple %s3, %s4
  %s6 = sld [smem:[#allocation0]]
  $region61: #{tpu_custom_call.1} parent=0
    _
  %s8 = ssub.s32 1, %s6
  %s9 = scalar_select 0, %s8, %s6
  $region1: #{tpu_custom_call.1} parent=0
    #allocation2 [shape = 'u8[61440]{0}', space=vmem, size = 0xf000, scoped, tag = 'input window, operand 1, single buffered']
    #allocation3 [shape = 's32[2]{0}', space=sflag, size = 0x8, scoped, tag = 'scoped memory for tpu_custom_call.1']
    #allocation4 [shape = 's32[2]{0}', space=sflag, size = 0x8, scoped, tag = 'scoped memory for tpu_custom_call.1']
    #allocation5 [shape = 'u8[512]{0}', space=vmem, size = 0x400, scoped, tag = 'output window, operand 0, single buffered']
    #allocation6 [shape = 'u8[512]{0}', space=vmem, size = 0x400, scoped, tag = 'output window, operand 1, single buffered']
    #allocation7 [shape = 's32[1]{0}', space=sflag, size = 0x4, scoped, tag = 'scoped memory for tpu_custom_call.1']
    %10 = vsyncpa [#allocation3], 0
    %11 = vsyncpa [#allocation4], 0
    %12 = vsyncpa [#allocation7], 0
    loop: start=0, step=1, limit=4
    $region2: #{tpu_custom_call.1} parent=1 // loop_pre_header
      _
    $region3: #{tpu_custom_call.1} parent=1 // loop_header
      %s14 = sphi 0, %s18
      %p15 = scmp.ge.s32.totalorder %s14, 4
      %s21 = sphi 0, %s33
      %s22 = sphi 0, %s29
      %s23 = sphi 0, %s21
      %s24 = sphi 0, %s22
      %s25 = sphi 0, %s23
      %s26 = sphi 0, %s24
      %s36 = sphi 0, %s38
      %s39 = sphi 0, %s36
      %s40 = sphi 0, %s39
      %s56 = sphi 0, %s40
      %s60 = sphi 0, %s60
      %s62 = sphi 0, %s60
      %s63 = sphi 0, %s62
      %s77 = sphi 0, %s63
      %s81 = sphi 0, %s81
      %s83 = sphi 0, %s81
      %s84 = sphi 0, %s83
      %s98 = sphi 0, %s84
      %s102 = sphi 0, %s102
      %s104 = sphi 0, %s102
      %s105 = sphi 0, %s104
      %s119 = sphi 0, %s105
      %s123 = sphi 0, %s123
      %s125 = sphi 0, %s123
      %s126 = sphi 0, %s125
      %s140 = sphi 0, %s126
    $region4: #{tpu_custom_call.1} parent=1 // loop_header_branch
      %17 = sbr.rel (%p15) target = $region8
    $region5: #{tpu_custom_call.1} parent=1 // loop_body
      %s19 = ssub.s32 %s14, 1
      %s20 = ssub.s32 %s14, 2
      %s27 = sadd.s32 1, %s22
      %p28 = scmp.ge.s32.totalorder %s27, 1
      %s29 = scalar_select %p28, 0, %s27
      %s30 = sadd.s32 1, %s21
      %s31 = scalar_select %p28, %s30, %s21
      %p32 = scmp.ge.s32.totalorder %s31, 2
      %s33 = scalar_select %p32, 0, %s31
      %s34 = ssub.s32 %s21, %s33
      %p35 = scmp.eq.s32.totalorder %s34, 0
      %s37 = sadd.s32 %s36, 1
      %s38 = scalar_select %p35, %s36, %s37
      %p41 = pneg %p35
      %p42 = scmp.eq.s32.totalorder %s14, 1
      %p43 = por %p41, %p42
      %p44 = scmp.ne.s32.totalorder %s36, %s39
      %p45 = scmp.eq.s32.totalorder %s14, 0
      %p46 = por %p44, %p45
      %p47 = scmp.ne.s32.totalorder %s36, %s39
      %p48 = scmp.eq.s32.totalorder %s19, 1
      %p49 = por %p47, %p48
      %p50 = scmp.ne.s32.totalorder %s39, %s40
      %p51 = scmp.eq.s32.totalorder %s19, 0
      %p52 = por %p50, %p51
      %p53 = scmp.ne.s32.totalorder %s39, %s40
      %p54 = scmp.eq.s32.totalorder %s20, 1
      %p55 = por %p53, %p54
      %p57 = scmp.ne.s32.totalorder %s40, %s56
      %p58 = scmp.eq.s32.totalorder %s20, 0
      %p59 = por %p57, %p58
      %s61 = sadd.s32 %s60, 1
      %p64 = scmp.eq.s32.totalorder %s14, 1
      %p65 = scmp.ne.s32.totalorder %s60, %s62
      %p66 = scmp.eq.s32.totalorder %s14, 0
      %p67 = por %p65, %p66
      %p68 = scmp.ne.s32.totalorder %s60, %s62
      %p69 = scmp.eq.s32.totalorder %s19, 1
      %p70 = por %p68, %p69
      %p71 = scmp.ne.s32.totalorder %s62, %s63
      %p72 = scmp.eq.s32.totalorder %s19, 0
      %p73 = por %p71, %p72
      %p74 = scmp.ne.s32.totalorder %s62, %s63
      %p75 = scmp.eq.s32.totalorder %s20, 1
      %p76 = por %p74, %p75
      %p78 = scmp.ne.s32.totalorder %s63, %s77
      %p79 = scmp.eq.s32.totalorder %s20, 0
      %p80 = por %p78, %p79
      %s82 = sadd.s32 %s81, 1
      %p85 = scmp.eq.s32.totalorder %s14, 1
      %p86 = scmp.ne.s32.totalorder %s81, %s83
      %p87 = scmp.eq.s32.totalorder %s14, 0
      %p88 = por %p86, %p87
      %p89 = scmp.ne.s32.totalorder %s81, %s83
      %p90 = scmp.eq.s32.totalorder %s19, 1
      %p91 = por %p89, %p90
      %p92 = scmp.ne.s32.totalorder %s83, %s84
      %p93 = scmp.eq.s32.totalorder %s19, 0
      %p94 = por %p92, %p93
      %p95 = scmp.ne.s32.totalorder %s83, %s84
      %p96 = scmp.eq.s32.totalorder %s20, 1
      %p97 = por %p95, %p96
      %p99 = scmp.ne.s32.totalorder %s84, %s98
      %p100 = scmp.eq.s32.totalorder %s20, 0
      %p101 = por %p99, %p100
      %s103 = sadd.s32 %s102, 1
      %p106 = scmp.eq.s32.totalorder %s14, 1
      %p107 = scmp.ne.s32.totalorder %s102, %s104
      %p108 = scmp.eq.s32.totalorder %s14, 0
      %p109 = por %p107, %p108
      %p110 = scmp.ne.s32.totalorder %s102, %s104
      %p111 = scmp.eq.s32.totalorder %s19, 1
      %p112 = por %p110, %p111
      %p113 = scmp.ne.s32.totalorder %s104, %s105
      %p114 = scmp.eq.s32.totalorder %s19, 0
      %p115 = por %p113, %p114
      %p116 = scmp.ne.s32.totalorder %s104, %s105
      %p117 = scmp.eq.s32.totalorder %s20, 1
      %p118 = por %p116, %p117
      %p120 = scmp.ne.s32.totalorder %s105, %s119
      %p121 = scmp.eq.s32.totalorder %s20, 0
      %p122 = por %p120, %p121
      %s124 = sadd.s32 %s123, 1
      %p127 = scmp.eq.s32.totalorder %s14, 1
      %p128 = scmp.ne.s32.totalorder %s123, %s125
      %p129 = scmp.eq.s32.totalorder %s14, 0
      %p130 = por %p128, %p129
      %p131 = scmp.ne.s32.totalorder %s123, %s125
      %p132 = scmp.eq.s32.totalorder %s19, 1
      %p133 = por %p131, %p132
      %p134 = scmp.ne.s32.totalorder %s125, %s126
      %p135 = scmp.eq.s32.totalorder %s19, 0
      %p136 = por %p134, %p135
      %p137 = scmp.ne.s32.totalorder %s125, %s126
      %p138 = scmp.eq.s32.totalorder %s20, 1
      %p139 = por %p137, %p138
      %p141 = scmp.ne.s32.totalorder %s126, %s140
      %p142 = scmp.eq.s32.totalorder %s20, 0
      %p143 = por %p141, %p142
      %p144 = scmp.le.s32.totalorder 1, %s14
      %p145 = scmp.lt.s32.totalorder %s14, 3
      %p146 = pnand %p144, %p145
      %p147 = pneg %p146
      // Predicated region
      $region9: #{tpu_custom_call.1} parent=5 // pred_check
        _
      $region10: #{tpu_custom_call.1} parent=5 // pred_check_branch
        %149 = sbr.rel (%p146) target = $region12
      $region11: #{tpu_custom_call.1} parent=5 // pred_region
        %s150 = ssub.s32 %s14, 1
        // Predicated region
        $region13: #{tpu_custom_call.1} parent=11 // pred_check
          %p151 = pneg %p73
        $region14: #{tpu_custom_call.1} parent=11 // pred_check_branch
          %153 = sbr.rel (%p151) target = $region16
        $region15: #{tpu_custom_call.1} parent=11 // pred_region
          %155 = vsyncadd [#allocation3], 0
          %s156 = sshll.u32 %s1, 4
          %s157 = int_to_ptr.hbm [resolvable:$true] %s156
          %s158 = sshll.u32 [#allocation2], 4
          %s159 = int_to_ptr.vmem [resolvable:$true] %s158
          %164 = dma.hbm_to_vmem [thread:$0]  %s157, 1920, %s159, [#allocation3], 128, 128, 8
        $region16: #{tpu_custom_call.1} parent=11 // pred_fallthru
          _
        // Predicated region
        $region17: #{tpu_custom_call.1} parent=11 // pred_check
          %p165 = pneg %p94
        $region18: #{tpu_custom_call.1} parent=11 // pred_check_branch
          %167 = sbr.rel (%p165) target = $region20
        $region19: #{tpu_custom_call.1} parent=11 // pred_region
          _
        $region20: #{tpu_custom_call.1} parent=11 // pred_fallthru
          _
      $region12: #{tpu_custom_call.1} parent=5 // pred_fallthru
        _
      %p168 = scmp.lt.s32.totalorder %s14, 2
      // Predicated region
      $region21: #{tpu_custom_call.1} parent=5 // pred_check
        %p169 = pneg %p168
      $region22: #{tpu_custom_call.1} parent=5 // pred_check_branch
        %171 = sbr.rel (%p169) target = $region24
      $region23: #{tpu_custom_call.1} parent=5 // pred_region
        // Predicated region
        $region25: #{tpu_custom_call.1} parent=23 // pred_check
          %p172 = pneg %p46
        $region26: #{tpu_custom_call.1} parent=23 // pred_check_branch
          %174 = sbr.rel (%p172) target = $region28
        $region27: #{tpu_custom_call.1} parent=23 // pred_region
          %p175 = scmp.lt.s32.totalorder %s21, 1
          %s176 = scalar_select %p175, %s21, 1
          %s177 = smul.addr %s176, 3
          %s178 = smul.addr %s177, 8
          %s179 = scalar_lea.vmem %s0, %s178
        $region28: #{tpu_custom_call.1} parent=23 // pred_fallthru
          _
      $region24: #{tpu_custom_call.1} parent=5 // pred_fallthru
        _
      %p180 = scmp.le.s32.totalorder 1, %s14
      %p181 = scmp.lt.s32.totalorder %s14, 3
      %p182 = pnand %p180, %p181
      %p183 = pneg %p182
      // Predicated region
      $region29: #{tpu_custom_call.1} parent=5 // pred_check
        _
      $region30: #{tpu_custom_call.1} parent=5 // pred_check_branch
        %185 = sbr.rel (%p182) target = $region32
      $region31: #{tpu_custom_call.1} parent=5 // pred_region
        %s186 = ssub.s32 %s14, 1
        // Predicated region
        $region33: #{tpu_custom_call.1} parent=31 // pred_check
          %p187 = pneg %p73
        $region34: #{tpu_custom_call.1} parent=31 // pred_check_branch
          %189 = sbr.rel (%p187) target = $region36
        $region35: #{tpu_custom_call.1} parent=31 // pred_region
          %191 = dma.done [#allocation3], 1920
        $region36: #{tpu_custom_call.1} parent=31 // pred_fallthru
          _
        %p192 = scmp.lt.s32.totalorder %s23, 1
        %s193 = scalar_select %p192, %s23, 1
        %s194 = smul.addr %s193, 3
        %s195 = smul.addr %s194, 8
        %s196 = scalar_lea.vmem %s0, %s195
        %p197 = pneg %p52
        %p198 = pneg %p49
        %p199 = pneg %p73
        %p200 = pneg %p70
        %p201 = pneg %p94
        %p202 = pneg %p91
        %p203 = pneg %p115
        %p204 = pneg %p112
        %p205 = pneg %p136
        %p206 = pneg %p133
        %p207 = scmp.lt.s32.totalorder %s23, 1
        %s208 = scalar_select %p207, %s23, 1
        %s209 = smul.addr %s208, 3
        %s210 = smul.addr %s209, 8
        %s211 = scalar_lea.vmem %s0, %s210
        %p212 = scmp.eq.s32.totalorder %s23, 0
        %p213 = scmp.eq.s32.totalorder %s24, 0
        %p214 = pnand %p212, %p213
        %p215 = pneg %p214
        // Predicated region
        $region37: #{tpu_custom_call.1} parent=31 // pred_check
          _
        $region38: #{tpu_custom_call.1} parent=31 // pred_check_branch
          %217 = sbr.rel (%p214) target = $region40
        $region39: #{tpu_custom_call.1} parent=31 // pred_region
          %218 = vst [vmem:[#allocation5] sm:$0x1] 0.0
          %219 = vst [vmem:[#allocation6] sm:$0x1] 0.0
        $region40: #{tpu_custom_call.1} parent=31 // pred_fallthru
          _
        %s220 = smul.u32 %s24, 16
        %s221 = scalar_lea.vmem %s211, %s220
        %v222 = vld [vmem:[%s221] sm:$0xff]
        %v223 = vld [vmem:[%s221 + $0x8] sm:$0xff]
        %v224 = vld [vmem:[#allocation2] sm:$0xff]
        %v225 = vld [vmem:[#allocation2 + $0x8] sm:$0xff]
        %v226 = vld [vmem:[#allocation2 + $0x10] sm:$0x7f]
        %s227 = sadd.s32 %s220, 1
        %s228 = scalar_lea.vmem %s211, %s227
        %v229 = vld [vmem:[%s228] sm:$0xff]
        %v230 = vld [vmem:[%s228 + $0x8] sm:$0xff]
        %s231 = scalar_lea.vmem [#allocation2], 24
        %v232 = vld [vmem:[%s231] sm:$0xff]
        %v233 = vld [vmem:[%s231 + $0x8] sm:$0xff]
        %v234 = vld [vmem:[%s231 + $0x10] sm:$0x7f]
        %vm235 = vcmask 187392
        %v237 = vsel %vm235, %v229, 0
        %v240 = vsel %vm235, %v230, 0
        %vm242 = vcmask 1046528
        %v244 = vsel %vm242, %v234, 0
        %246 = vmatpush.msra.mxu0 0.0
        %247 = vmatpush.msra.mxu0 0.0
        %248 = vmatpush.msra.mxu0 0.0
        %249 = vmatpush.msra.mxu0 0.0
        %250 = vmatpush.msra.mxu0 0.0
        %251 = vmatpush.msra.mxu0 0.0
        %252 = vmatpush.msra.mxu0 0.0
        %253 = vmatpush.msra.mxu0 0.0
        %254 = vmatpush.msra.mxu0 0.0
        %255 = vmatpush.msra.mxu0 0.0
        %256 = vmatpush.msra.mxu0 0.0
        %257 = vmatpush.msra.mxu0 0.0
        %258 = vmatpush.msra.mxu0 0.0
        %259 = vmatpush.msra.mxu0 %v244
        %260 = vmatpush.msra.mxu0 %v233
        %261 = vmatpush.msra.mxu0 %v232
        %262 = vmatmul.f32.gmra.mxu0 %v237
        %v263 = vpop.f32.mrf.mxu0
        %v264 = vadd.f32 0.0, %v263
        %265 = vmatmul.f32.gmra.mxu0 %v240
        %v266 = vpop.f32.mrf.mxu0
        %v267 = vadd.f32 0.0, %v266
        %268 = vdwg.mxu0
        %v270 = vsel %vm235, %v222, 0
        %v273 = vsel %vm235, %v223, 0
        %v276 = vsel %vm242, %v226, 0
        %278 = vmatpush.msra.mxu0 0.0
        %279 = vmatpush.msra.mxu0 0.0
        %280 = vmatpush.msra.mxu0 0.0
        %281 = vmatpush.msra.mxu0 0.0
        %282 = vmatpush.msra.mxu0 0.0
        %283 = vmatpush.msra.mxu0 0.0
        %284 = vmatpush.msra.mxu0 0.0
        %285 = vmatpush.msra.mxu0 0.0
        %286 = vmatpush.msra.mxu0 0.0
        %287 = vmatpush.msra.mxu0 0.0
        %288 = vmatpush.msra.mxu0 0.0
        %289 = vmatpush.msra.mxu0 0.0
        %290 = vmatpush.msra.mxu0 0.0
        %291 = vmatpush.msra.mxu0 %v276
        %292 = vmatpush.msra.mxu0 %v225
        %293 = vmatpush.msra.mxu0 %v224
        %294 = vmatmul.f32.gmra.mxu0 %v270
        %v295 = vpop.f32.mrf.mxu0
        %v296 = vadd.f32 %v264, %v295
        %297 = vmatmul.f32.gmra.mxu0 %v273
        %v298 = vpop.f32.mrf.mxu0
        %v299 = vadd.f32 %v267, %v298
        %300 = vdwg.mxu0
        %s301 = sadd.s32 %s220, 2
        %s302 = scalar_lea.vmem %s211, %s301
        %v303 = vld [vmem:[%s302] sm:$0xff]
        %v304 = vld [vmem:[%s302 + $0x8] sm:$0xff]
        %s305 = scalar_lea.vmem [#allocation2], 48
        %v306 = vld [vmem:[%s305] sm:$0xff]
        %v307 = vld [vmem:[%s305 + $0x8] sm:$0xff]
        %v308 = vld [vmem:[%s305 + $0x10] sm:$0x7f]
        %v310 = vsel %vm235, %v303, 0
        %v313 = vsel %vm235, %v304, 0
        %v316 = vsel %vm242, %v308, 0
        %318 = vmatpush.msra.mxu0 0.0
        %319 = vmatpush.msra.mxu0 0.0
        %320 = vmatpush.msra.mxu0 0.0
        %321 = vmatpush.msra.mxu0 0.0
        %322 = vmatpush.msra.mxu0 0.0
        %323 = vmatpush.msra.mxu0 0.0
        %324 = vmatpush.msra.mxu0 0.0
        %325 = vmatpush.msra.mxu0 0.0
        %326 = vmatpush.msra.mxu0 0.0
        %327 = vmatpush.msra.mxu0 0.0
        %328 = vmatpush.msra.mxu0 0.0
        %329 = vmatpush.msra.mxu0 0.0
        %330 = vmatpush.msra.mxu0 0.0
        %331 = vmatpush.msra.mxu0 %v316
        %332 = vmatpush.msra.mxu0 %v307
        %333 = vmatpush.msra.mxu0 %v306
        %334 = vmatmul.f32.gmra.mxu0 %v310
        %v335 = vpop.f32.mrf.mxu0
        %v336 = vadd.f32 0.0, %v335
        %337 = vmatmul.f32.gmra.mxu0 %v313
        %v338 = vpop.f32.mrf.mxu0
        %v339 = vadd.f32 0.0, %v338
        %340 = vdwg.mxu0
        %v341 = vadd.f32 %v296, %v336
        %v342 = vadd.f32 %v299, %v339
        %s343 = sadd.s32 %s220, 3
        %s344 = scalar_lea.vmem %s211, %s343
        %v345 = vld [vmem:[%s344] sm:$0xff]
        %v346 = vld [vmem:[%s344 + $0x8] sm:$0xff]
        %s347 = scalar_lea.vmem [#allocation2], 72
        %v348 = vld [vmem:[%s347] sm:$0xff]
        %v349 = vld [vmem:[%s347 + $0x8] sm:$0xff]
        %v350 = vld [vmem:[%s347 + $0x10] sm:$0x7f]
        %v352 = vsel %vm235, %v345, 0
        %v355 = vsel %vm235, %v346, 0
        %v358 = vsel %vm242, %v350, 0
        %360 = vmatpush.msra.mxu0 0.0
        %361 = vmatpush.msra.mxu0 0.0
        %362 = vmatpush.msra.mxu0 0.0
        %363 = vmatpush.msra.mxu0 0.0
        %364 = vmatpush.msra.mxu0 0.0
        %365 = vmatpush.msra.mxu0 0.0
        %366 = vmatpush.msra.mxu0 0.0
        %367 = vmatpush.msra.mxu0 0.0
        %368 = vmatpush.msra.mxu0 0.0
        %369 = vmatpush.msra.mxu0 0.0
        %370 = vmatpush.msra.mxu0 0.0
        %371 = vmatpush.msra.mxu0 0.0
        %372 = vmatpush.msra.mxu0 0.0
        %373 = vmatpush.msra.mxu0 %v358
        %374 = vmatpush.msra.mxu0 %v349
        %375 = vmatpush.msra.mxu0 %v348
        %376 = vmatmul.f32.gmra.mxu0 %v352
        %v377 = vpop.f32.mrf.mxu0
        %v378 = vadd.f32 0.0, %v377
        %379 = vmatmul.f32.gmra.mxu0 %v355
        %v380 = vpop.f32.mrf.mxu0
        %v381 = vadd.f32 0.0, %v380
        %382 = vdwg.mxu0
        %v383 = vadd.f32 %v341, %v378
        %v384 = vadd.f32 %v342, %v381
        %s385 = sadd.s32 %s220, 4
        %s386 = scalar_lea.vmem %s211, %s385
        %v387 = vld [vmem:[%s386] sm:$0xff]
        %v388 = vld [vmem:[%s386 + $0x8] sm:$0xff]
        %s389 = scalar_lea.vmem [#allocation2], 96
        %v390 = vld [vmem:[%s389] sm:$0xff]
        %v391 = vld [vmem:[%s389 + $0x8] sm:$0xff]
        %v392 = vld [vmem:[%s389 + $0x10] sm:$0x7f]
        %v394 = vsel %vm235, %v387, 0
        %v397 = vsel %vm235, %v388, 0
        %v400 = vsel %vm242, %v392, 0
        %402 = vmatpush.msra.mxu0 0.0
        %403 = vmatpush.msra.mxu0 0.0
        %404 = vmatpush.msra.mxu0 0.0
        %405 = vmatpush.msra.mxu0 0.0
        %406 = vmatpush.msra.mxu0 0.0
        %407 = vmatpush.msra.mxu0 0.0
        %408 = vmatpush.msra.mxu0 0.0
        %409 = vmatpush.msra.mxu0 0.0
        %410 = vmatpush.msra.mxu0 0.0
        %411 = vmatpush.msra.mxu0 0.0
        %412 = vmatpush.msra.mxu0 0.0
        %413 = vmatpush.msra.mxu0 0.0
        %414 = vmatpush.msra.mxu0 0.0
        %415 = vmatpush.msra.mxu0 %v400
        %416 = vmatpush.msra.mxu0 %v391
        %417 = vmatpush.msra.mxu0 %v390
        %418 = vmatmul.f32.gmra.mxu0 %v394
        %v419 = vpop.f32.mrf.mxu0
        %v420 = vadd.f32 0.0, %v419
        %421 = vmatmul.f32.gmra.mxu0 %v397
        %v422 = vpop.f32.mrf.mxu0
        %v423 = vadd.f32 0.0, %v422
        %424 = vdwg.mxu0
        %v425 = vadd.f32 %v383, %v420
        %v426 = vadd.f32 %v384, %v423
        %v427 = vld [vmem:[%s2] sm:$0x1]
        %v429 = vperm.slane %v427, 0
        %v431 = vadd.f32 %v425, %v429
        %v432 = vadd.f32 %v426, %v429
        %vm433 = vcmp.ge.f32.partialorder %v431, 0.0
        %vm434 = vcmp.ge.f32.partialorder %v432, 0.0
        %v435 = vmul.f32 %v431, 0.01
        %v436 = vmul.f32 %v432, 0.01
        %v437 = vsel %vm433, %v431, %v435
        %v438 = vsel %vm434, %v432, %v436
        %v439 = vlaneseq
        %v440 = vshrl.u32 %v439, 7
        %v441 = vadd.s32 %v440, 8
        %v442 = vstv %s220
        %v443 = vadd.s32 %v442, %v440
        %v444 = vadd.s32 %v442, %v441
        %vm445 = vcmp.lt.s32.totalorder %v443, 12
        %vm446 = vcmp.lt.s32.totalorder %v444, 12
        %v447 = vsel %vm445, 1, 0
        %v448 = vsel %vm446, 1, 0
        %vm449 = vcmp.eq.s32.totalorder %v447, 1
        %vm450 = vcmp.eq.s32.totalorder %v448, 1
        %v451 = vsel %vm449, %v437, 0.0
        %v452 = vsel %vm450, %v438, 0.0
        %v453 = vld [vmem:[#allocation5] sm:$0x1]
        %v454 = vadd.f32 %v451, %v452
        %v455 = vrot.slane %v454, 4
        %v456 = vadd.f32 %v454, %v455
        %v457 = vrot.slane %v456, 2
        %v458 = vadd.f32 %v456, %v457
        %v459 = vrot.slane %v458, 1
        %v460 = vadd.f32 %v458, %v459
        %v461 = vadd.f32 %v453, %v460
        %462 = vst [vmem:[#allocation5] sm:$0x1] %v461
        %v463 = vld [vmem:[#allocation6] sm:$0x1]
        %v464 = vmul.f32 %v451, %v451
        %v465 = vmul.f32 %v452, %v452
        %v466 = vadd.f32 %v464, %v465
        %v467 = vrot.slane %v466, 4
        %v468 = vadd.f32 %v466, %v467
        %v469 = vrot.slane %v468, 2
        %v470 = vadd.f32 %v468, %v469
        %v471 = vrot.slane %v470, 1
        %v472 = vadd.f32 %v470, %v471
        %v473 = vadd.f32 %v463, %v472
        %474 = vst [vmem:[#allocation6] sm:$0x1] %v473
        // Predicated region
        $region41: #{tpu_custom_call.1} parent=31 // pred_check
          %p475 = pneg %p112
        $region42: #{tpu_custom_call.1} parent=31 // pred_check_branch
          %477 = sbr.rel (%p475) target = $region44
        $region43: #{tpu_custom_call.1} parent=31 // pred_region
          %479 = vsyncadd [#allocation4], 0
          %s481 = sshll.u32 [#allocation5], 4
          %s482 = int_to_ptr.vmem [resolvable:$true] %s481
          %s483 = sshll.u32 %s3, 4
          %s484 = int_to_ptr.hbm [resolvable:$true] %s483
          %486 = dma.vmem_to_hbm [thread:$0]  %s482, 16, %s484, [#allocation4]
        $region44: #{tpu_custom_call.1} parent=31 // pred_fallthru
          _
        // Predicated region
        $region45: #{tpu_custom_call.1} parent=31 // pred_check
          %p487 = pneg %p133
        $region46: #{tpu_custom_call.1} parent=31 // pred_check_branch
          %489 = sbr.rel (%p487) target = $region48
        $region47: #{tpu_custom_call.1} parent=31 // pred_region
          %491 = vsyncadd [#allocation7], 0
          %s493 = sshll.u32 [#allocation6], 4
          %s494 = int_to_ptr.vmem [resolvable:$true] %s493
          %s495 = sshll.u32 %s4, 4
          %s496 = int_to_ptr.hbm [resolvable:$true] %s495
          %498 = dma.vmem_to_hbm [thread:$0]  %s494, 16, %s496, [#allocation7]
        $region48: #{tpu_custom_call.1} parent=31 // pred_fallthru
          _
        // Predicated region
        $region49: #{tpu_custom_call.1} parent=31 // pred_check
          %p499 = pneg %p112
        $region50: #{tpu_custom_call.1} parent=31 // pred_check_branch
          %501 = sbr.rel (%p499) target = $region52
        $region51: #{tpu_custom_call.1} parent=31 // pred_region
          %503 = dma.done [#allocation4], 16
        $region52: #{tpu_custom_call.1} parent=31 // pred_fallthru
          _
        // Predicated region
        $region53: #{tpu_custom_call.1} parent=31 // pred_check
          %p504 = pneg %p133
        $region54: #{tpu_custom_call.1} parent=31 // pred_check_branch
          %506 = sbr.rel (%p504) target = $region56
        $region55: #{tpu_custom_call.1} parent=31 // pred_region
          %508 = dma.done [#allocation7], 16
        $region56: #{tpu_custom_call.1} parent=31 // pred_fallthru
          _
      $region32: #{tpu_custom_call.1} parent=5 // pred_fallthru
        _
      %p509 = scmp.le.s32.totalorder 2, %s14
      // Predicated region
      $region57: #{tpu_custom_call.1} parent=5 // pred_check
        %p510 = pneg %p509
      $region58: #{tpu_custom_call.1} parent=5 // pred_check_branch
        %512 = sbr.rel (%p510) target = $region60
      $region59: #{tpu_custom_call.1} parent=5 // pred_region
        %s513 = ssub.s32 %s14, 2
      $region60: #{tpu_custom_call.1} parent=5 // pred_fallthru
        _
    $region6: #{tpu_custom_call.1} parent=1 // loop_footer
      %s18 = sadd.s32 1, %s14
    $region7: #{tpu_custom_call.1} parent=1 // loop_footer_branch
      %13 = sbr.rel target = $region3
    $region8: #{tpu_custom_call.1} parent=1 // loop_exit
      _
    %514 = vsyncpa [#allocation3], 1
    %s515 = scalar_lea.sflag [#allocation3], 1
    %516 = vsyncpa %s515, 1
    %517 = vsyncpa [#allocation4], 1
    %s518 = scalar_lea.sflag [#allocation4], 1
    %519 = vsyncpa %s518, 1
    %520 = vsyncpa [#allocation7], 1

</llo_original>
